<compile_context>
chip_gen: v6e
topology: v6e:2x2x1
jax: 0.10.0
libtpu: 0.0.40
codegen_flags: <defaults>
</compile_context>

<pallas_src>
import functools

import jax
import jax.numpy as jnp
import numpy as np
from jax import lax
from jax.experimental import pallas as pl
from jax.experimental.pallas import tpu as pltpu

D_MODEL = 3
NUM_HEADS = 1
SEQ_LEN = 6
D_K = D_MODEL // NUM_HEADS
D_PAD = 128          # lane-dense padded feature width
BATCH = 4            # example batch for the gridded call (module itself is per-sequence)


def fused_attention_kernel(x_ref, w_ref, o_ref):
    """Fused self-attention for one sequence (one grid step).

    x_ref: (S, D_PAD)       -- real features in cols [0, D_MODEL), col D_MODEL == 1.0
                               (bias-folding column), remaining cols zero.
    w_ref: (D_PAD, 3*D_PAD) -- [Wq*scale | Wk | Wv] in [in, out] layout, biases folded
                               into row D_MODEL, everything else zero-padded.
                               Resident in VMEM across the whole grid (constant index_map).
    o_ref: (S, D_PAD)       -- real output in cols [0, D_MODEL), rest zero.
    """
    x = x_ref[...]
    w = w_ref[...]

    # Single fused QKV projection (one MXU pass); scale & biases already folded.
    qkv = jnp.dot(x, w, preferred_element_type=jnp.float32)         # (S, 3*D_PAD)
    q = qkv[:, :D_PAD]
    k = qkv[:, D_PAD:2 * D_PAD]
    v = qkv[:, 2 * D_PAD:]

    # scores = Q @ K^T without materializing a transpose (contract last dims).
    scores = lax.dot_general(q, k, (((1,), (1,)), ((), ())),
                             preferred_element_type=jnp.float32)    # (S, S)

    # Max-subtracted softmax in f32.  Exact reciprocal (true divide) so the
    # result matches the reference to f32 rounding; folded into the small
    # (S, D_PAD) AV result instead of the (S, S) probability tile.
    m = jnp.max(scores, axis=-1, keepdims=True)
    p = jnp.exp(scores - m)
    l = jnp.sum(p, axis=-1, keepdims=True)
    inv_l = pl.reciprocal(l, approx=False)

    out = jnp.dot(p, v, preferred_element_type=jnp.float32)         # (S, D_PAD)
    o_ref[...] = out * inv_l
    # NOTE: fc_out exists in __init__ but is never used in forward(); not applied.


def pack_qkv_weights(wq, bq, wk, bk, wv, bv):
    """Build the fused [D_PAD, 3*D_PAD] QKV weight ONCE (module init).

    PyTorch Linear weights are (out, in); we store (in, out), fold 1/sqrt(d_k)
    into the Q block and the biases into row D_MODEL (hit by the ones column).
    """
    assert D_MODEL + 1 <= D_PAD, "bias-row/ones-column folding needs D_MODEL < D_PAD"
    scale = np.float32(1.0 / np.sqrt(np.float32(D_K)))

    def pack_block(w, b, s):
        blk = np.zeros((D_PAD, D_PAD), np.float32)
        blk[:D_MODEL, :D_MODEL] = np.asarray(w, np.float32).T * s
        blk[D_MODEL, :D_MODEL] = np.asarray(b, np.float32) * s
        return blk

    w_qkv = np.concatenate([pack_block(wq, bq, scale),   # scale folded into Q
                            pack_block(wk, bk, 1.0),
                            pack_block(wv, bv, 1.0)], axis=1)   # (D_PAD, 3*D_PAD)
    return jnp.asarray(w_qkv)


@jax.jit
def _batched_attention(xb, w_qkv):
    """xb: (B, S, D_MODEL) -> (B, S, D_MODEL). One pallas_call, grid over batch."""
    B, S, D = xb.shape
    # Lane-dense pad with a single concatenate: [x | ones (bias column) | zeros].
    ones = jnp.ones((B, S, 1), jnp.float32)
    zeros = jnp.zeros((B, S, D_PAD - D - 1), jnp.float32)
    x_aug = jnp.concatenate([xb.astype(jnp.float32), ones, zeros], axis=-1)

    out_pad = pl.pallas_call(
        fused_attention_kernel,
        out_shape=jax.ShapeDtypeStruct((B, S, D_PAD), jnp.float32),
        grid=(B,),
        in_specs=[
            # per-sequence x tile (leading batch dim squeezed away)
            pl.BlockSpec((None, S, D_PAD), lambda b: (b, 0, 0)),
            # constant index_map -> weight stays resident in VMEM across grid steps
            pl.BlockSpec((D_PAD, 3 * D_PAD), lambda b: (0, 0)),
        ],
        out_specs=pl.BlockSpec((None, S, D_PAD), lambda b: (b, 0, 0)),
        compiler_params=pltpu.CompilerParams(
            dimension_semantics=("parallel",)),   # 2-TC sharding on v7x; no-op on v5e/v6e
    )(x_aug, w_qkv)
    return out_pad[..., :D]
    # TODO(synk): for real attention sizes, add a query-tile grid with online
    # softmax (flash structure), bf16 MXU inputs on v6e/v7x (fp8-not-int8 on
    # v7x), and re-derive KV tiles / vmem_limit_bytes for v7x's 64 MiB VMEM.


class PallasSelfAttention:
    """Module-like wrapper: weights are packed once at init (not per forward)."""

    def __init__(self, wq, bq, wk, bk, wv, bv):
        self.w_qkv = pack_qkv_weights(wq, bq, wk, bk, wv, bv)

    def __call__(self, x):                 # x: (S, D_MODEL) — module semantics
        return _batched_attention(x[None], self.w_qkv)[0]

    def batched(self, xb):                 # xb: (B, S, D_MODEL)
        return _batched_attention(xb, self.w_qkv)


def reference(x, wq, bq, wk, bk, wv, bv):
    q = x @ wq.T + bq
    k = x @ wk.T + bk
    v = x @ wv.T + bv
    scores = (q @ k.T) / np.sqrt(np.float32(D_K))
    scores = scores - scores.max(axis=-1, keepdims=True)
    p = np.exp(scores)
    attn = p / p.sum(axis=-1, keepdims=True)
    return attn @ v


if __name__ == "__main__":
    key = jax.random.PRNGKey(0)
    kx, kq, kbq, kk, kbk, kv, kbv = jax.random.split(key, 7)

    # Deterministic synthetic parameters (PyTorch Linear shapes: W=(D,D), b=(D,))
    xb = jax.random.normal(kx, (BATCH, SEQ_LEN, D_MODEL), dtype=jnp.float32)
    wq = jax.random.normal(kq, (D_MODEL, D_MODEL), dtype=jnp.float32) * 0.5
    bq = jax.random.normal(kbq, (D_MODEL,), dtype=jnp.float32) * 0.1
    wk = jax.random.normal(kk, (D_MODEL, D_MODEL), dtype=jnp.float32) * 0.5
    bk = jax.random.normal(kbk, (D_MODEL,), dtype=jnp.float32) * 0.1
    wv = jax.random.normal(kv, (D_MODEL, D_MODEL), dtype=jnp.float32) * 0.5
    bv = jax.random.normal(kbv, (D_MODEL,), dtype=jnp.float32) * 0.1

    attn = PallasSelfAttention(wq, bq, wk, bk, wv, bv)   # weights packed once here

    # 1) Module-exact path: single (S, D) sequence, as in the PyTorch forward.
    out_single = jax.block_until_ready(attn(xb[0]))
    ref_single = reference(np.asarray(xb[0]), np.asarray(wq), np.asarray(bq),
                           np.asarray(wk), np.asarray(bk),
                           np.asarray(wv), np.asarray(bv))
    np.testing.assert_allclose(np.asarray(out_single), ref_single,
                               rtol=1e-4, atol=1e-5)

    # 2) Batched path: one pallas_call, grid over batch, weight resident in VMEM.
    out_batched = jax.block_until_ready(attn.batched(xb))
    for b in range(BATCH):
        ref_b = reference(np.asarray(xb[b]), np.asarray(wq), np.asarray(bq),
                          np.asarray(wk), np.asarray(bk),
                          np.asarray(wv), np.asarray(bv))
        np.testing.assert_allclose(np.asarray(out_batched[b]), ref_b,
                                   rtol=1e-4, atol=1e-5)

    print("KERNEL_OK")
</pallas_src>

<mosaic_0001>
module attributes {stable_mosaic.version = 11 : i64} {
  func.func @fused_attention_kernel(%arg0: i32, %arg1: memref<1x6x128xf32, #tpu.memory_space<vmem>>, %arg2: memref<128x384xf32, #tpu.memory_space<vmem>>, %arg3: memref<1x6x128xf32, #tpu.memory_space<vmem>>) attributes {dimension_semantics = [#tpu.dimension_semantics<parallel>], iteration_bounds = array<i64: 1>, scalar_prefetch = 0 : i64, scratch_operands = 0 : i64, tpu.core_type = #tpu.core_type<tc>, window_params = [{transform_indices = @transform_0, window_bounds = array<i64: 1, 6, 128>}, {pipeline_mode = #tpu.pipeline_mode<synchronous>, transform_indices = @transform_1, window_bounds = array<i64: 128, 384>}, {transform_indices = @transform_2, window_bounds = array<i64: 1, 6, 128>}]} {
    %c0 = arith.constant 0 : index
    %c0_0 = arith.constant 0 : index
    %c0_1 = arith.constant 0 : index
    %0 = vector.load %arg1[%c0, %c0_0, %c0_1] : memref<1x6x128xf32, #tpu.memory_space<vmem>>, vector<1x6x128xf32>
    %1 = vector.shape_cast %0 : vector<1x6x128xf32> to vector<6x128xf32>
    %c0_2 = arith.constant 0 : index
    %c0_3 = arith.constant 0 : index
    %2 = vector.load %arg2[%c0_2, %c0_3] : memref<128x384xf32, #tpu.memory_space<vmem>>, vector<128x384xf32>
    %cst = arith.constant dense<0.000000e+00> : vector<6x384xf32>
    %3 = tpu.matmul %1, %2, %cst {dimension_numbers = #tpu.dot_dimension_numbers<[1], [0], [0], [1], [0, 0, 1, 1], [], []>} : vector<6x128xf32>, vector<128x384xf32>, vector<6x384xf32> -> vector<6x384xf32>
    %4 = vector.extract_strided_slice %3 {offsets = [0, 0], sizes = [6, 128], strides = [1, 1]} : vector<6x384xf32> to vector<6x128xf32>
    %5 = vector.extract_strided_slice %3 {offsets = [0, 128], sizes = [6, 128], strides = [1, 1]} : vector<6x384xf32> to vector<6x128xf32>
    %6 = vector.extract_strided_slice %3 {offsets = [0, 256], sizes = [6, 128], strides = [1, 1]} : vector<6x384xf32> to vector<6x128xf32>
    %cst_4 = arith.constant dense<0.000000e+00> : vector<6x6xf32>
    %7 = tpu.matmul %4, %5, %cst_4 {dimension_numbers = #tpu.dot_dimension_numbers<[1], [1], [0], [0], [0, 0, 1, 0], [], []>} : vector<6x128xf32>, vector<6x128xf32>, vector<6x6xf32> -> vector<6x6xf32>
    %cst_5 = arith.constant dense<0xFF800000> : vector<6xf32>
    %8 = vector.multi_reduction <maximumf>, %7, %cst_5 [1] : vector<6x6xf32> to vector<6xf32>
    %9 = vector.shape_cast %8 : vector<6xf32> to vector<6x1xf32>
    %10 = vector.broadcast %9 : vector<6x1xf32> to vector<6x6xf32>
    %11 = arith.subf %7, %10 : vector<6x6xf32>
    %12 = math.exp %11 : vector<6x6xf32>
    %cst_6 = arith.constant dense<0.000000e+00> : vector<6xf32>
    %13 = vector.multi_reduction <add>, %12, %cst_6 [1] : vector<6x6xf32> to vector<6xf32>
    %14 = vector.shape_cast %13 : vector<6xf32> to vector<6x1xf32>
    %15 = tpu.reciprocal %14 : vector<6x1xf32> -> vector<6x1xf32>
    %cst_7 = arith.constant dense<0.000000e+00> : vector<6x128xf32>
    %16 = tpu.matmul %12, %6, %cst_7 {dimension_numbers = #tpu.dot_dimension_numbers<[1], [0], [0], [1], [0, 0, 1, 1], [], []>} : vector<6x6xf32>, vector<6x128xf32>, vector<6x128xf32> -> vector<6x128xf32>
    %17 = vector.broadcast %15 : vector<6x1xf32> to vector<6x128xf32>
    %18 = arith.mulf %16, %17 : vector<6x128xf32>
    %c0_8 = arith.constant 0 : index
    %c0_9 = arith.constant 0 : index
    %c0_10 = arith.constant 0 : index
    %19 = vector.load %arg3[%c0_8, %c0_9, %c0_10] : memref<1x6x128xf32, #tpu.memory_space<vmem>>, vector<1x6x128xf32>
    %20 = vector.shape_cast %19 : vector<1x6x128xf32> to vector<6x128xf32>
    %21 = vector.shape_cast %18 : vector<6x128xf32> to vector<1x6x128xf32>
    tpu.vector_store %arg3[%c0_8, %c0_9, %c0_10], %21 {strides = array<i32>} : memref<1x6x128xf32, #tpu.memory_space<vmem>>, vector<1x6x128xf32>,
    return
  }
  func.func @transform_0(%arg0: i32) -> (i32, i32, i32) {
    %c0_i32 = arith.constant 0 : i32
    %c0_i32_0 = arith.constant 0 : i32
    %c0_i32_1 = arith.constant 0 : i32
    return %arg0, %c0_i32, %c0_i32_0 : i32, i32, i32
  }
  func.func @transform_1(%arg0: i32) -> (i32, i32) {
    %c0_i32 = arith.constant 0 : i32
    %c0_i32_0 = arith.constant 0 : i32
    %c0_i32_1 = arith.constant 0 : i32
    return %c0_i32, %c0_i32_0 : i32, i32
  }
  func.func @transform_2(%arg0: i32) -> (i32, i32, i32) {
    %c0_i32 = arith.constant 0 : i32
    %c0_i32_0 = arith.constant 0 : i32
    %c0_i32_1 = arith.constant 0 : i32
    return %arg0, %c0_i32, %c0_i32_0 : i32, i32, i32
  }
}

</mosaic_0001>

<llo_original>
// kernel: _batched_attention.1
$region0: #{_batched_attention.1}
  #allocation0 [shape = 'u32[]', space=smem, size = 0x4, offset = 0x4, fixed_abs, tag = 'smem constant byte address 0x4 - core index']
  #allocation1 [shape = 'u32[144,128]{1,0:T(1,128)}', space=vmem, size = 0x12000, scoped, tag = 'internal scratch']
  %s0 = inlined_call_operand.vmem [shape: f32[1,6,128], index: 0, kind: input, shape index: {}]
  %s1 = inlined_call_operand.hbm [shape: f32[128,384], index: 1, kind: input, shape index: {}]
  %s2 = inlined_call_operand.vmem [shape: f32[1,6,128], index: 2, kind: output, shape index: {}]
  %s3 = sld [smem:[#allocation0]]
  $region22: #{_batched_attention.1} parent=0
    _
  %s5 = ssub.s32 1, %s3
  %s6 = scalar_select 0, %s5, %s3
  $region1: #{_batched_attention.1} parent=0
    #allocation2 [shape = 'u8[196608]{0}', space=vmem, size = 0x30000, scoped, tag = 'input window, operand 1, single buffered']
    #allocation3 [shape = 's32[1]{0}', space=sflag, size = 0x4, scoped, tag = 'scoped memory for _batched_attention.1']
    %7 = vsyncpa [#allocation3], 0
    // Predicated region
    $region2: #{_batched_attention.1} parent=1 // pred_check
      _
    $region3: #{_batched_attention.1} parent=1 // pred_check_branch
      %9 = sbr.rel (0) target = $region5
    $region4: #{_batched_attention.1} parent=1 // pred_region
      _
    $region5: #{_batched_attention.1} parent=1 // pred_fallthru
      _
    // Predicated region
    $region6: #{_batched_attention.1} parent=1 // pred_check
      _
    $region7: #{_batched_attention.1} parent=1 // pred_check_branch
      %11 = sbr.rel (0) target = $region9
    $region8: #{_batched_attention.1} parent=1 // pred_region
      %s13 = ssub.s32 6144, 6144
      %14 = vsyncadd [#allocation3], %s13
      %s15 = sshll.u32 [#allocation2], 4
      %s16 = int_to_ptr.vmem [resolvable:$true] %s15
      %21 = dma.hbm_to_vmem [thread:$0]  %s1, 6144, %s16, [#allocation3], 384, 384, 24
    $region9: #{_batched_attention.1} parent=1 // pred_fallthru
      _
    // Predicated region
    $region10: #{_batched_attention.1} parent=1 // pred_check
      _
    $region11: #{_batched_attention.1} parent=1 // pred_check_branch
      %23 = sbr.rel (0) target = $region13
    $region12: #{_batched_attention.1} parent=1 // pred_region
      %24 = dma.done [#allocation3], 6144
    $region13: #{_batched_attention.1} parent=1 // pred_fallthru
      _
    %v25 = vld [vmem:[%s0] sm:$0x3f]
    %v26 = vld [vmem:[#allocation2] sm:$0xff]
    %v27 = vld [vmem:[#allocation2 + $0x8] sm:$0xff]
    %v28 = vld [vmem:[#allocation2 + $0x10] sm:$0xff]
    %v29 = vld [vmem:[#allocation2 + $0x18] sm:$0xff]
    %v30 = vld [vmem:[#allocation2 + $0x20] sm:$0xff]
    %v31 = vld [vmem:[#allocation2 + $0x28] sm:$0xff]
    %v32 = vld [vmem:[#allocation2 + $0x30] sm:$0xff]
    %v33 = vld [vmem:[#allocation2 + $0x38] sm:$0xff]
    %v34 = vld [vmem:[#allocation2 + $0x40] sm:$0xff]
    %v35 = vld [vmem:[#allocation2 + $0x48] sm:$0xff]
    %v36 = vld [vmem:[#allocation2 + $0x50] sm:$0xff]
    %v37 = vld [vmem:[#allocation2 + $0x58] sm:$0xff]
    %v38 = vld [vmem:[#allocation2 + $0x60] sm:$0xff]
    %v39 = vld [vmem:[#allocation2 + $0x68] sm:$0xff]
    %v40 = vld [vmem:[#allocation2 + $0x70] sm:$0xff]
    %v41 = vld [vmem:[#allocation2 + $0x78] sm:$0xff]
    %v42 = vld [vmem:[#allocation2 + $0x80] sm:$0xff]
    %v43 = vld [vmem:[#allocation2 + $0x88] sm:$0xff]
    %v44 = vld [vmem:[#allocation2 + $0x90] sm:$0xff]
    %v45 = vld [vmem:[#allocation2 + $0x98] sm:$0xff]
    %v46 = vld [vmem:[#allocation2 + $0xa0] sm:$0xff]
    %v47 = vld [vmem:[#allocation2 + $0xa8] sm:$0xff]
    %v48 = vld [vmem:[#allocation2 + $0xb0] sm:$0xff]
    %v49 = vld [vmem:[#allocation2 + $0xb8] sm:$0xff]
    %v50 = vld [vmem:[#allocation2 + $0xc0] sm:$0xff]
    %v51 = vld [vmem:[#allocation2 + $0xc8] sm:$0xff]
    %v52 = vld [vmem:[#allocation2 + $0xd0] sm:$0xff]
    %v53 = vld [vmem:[#allocation2 + $0xd8] sm:$0xff]
    %v54 = vld [vmem:[#allocation2 + $0xe0] sm:$0xff]
    %v55 = vld [vmem:[#allocation2 + $0xe8] sm:$0xff]
    %v56 = vld [vmem:[#allocation2 + $0xf0] sm:$0xff]
    %v57 = vld [vmem:[#allocation2 + $0xf8] sm:$0xff]
    %v58 = vld [vmem:[#allocation2 + $0x100] sm:$0xff]
    %v59 = vld [vmem:[#allocation2 + $0x108] sm:$0xff]
    %v60 = vld [vmem:[#allocation2 + $0x110] sm:$0xff]
    %v61 = vld [vmem:[#allocation2 + $0x118] sm:$0xff]
    %v62 = vld [vmem:[#allocation2 + $0x120] sm:$0xff]
    %v63 = vld [vmem:[#allocation2 + $0x128] sm:$0xff]
    %v64 = vld [vmem:[#allocation2 + $0x130] sm:$0xff]
    %v65 = vld [vmem:[#allocation2 + $0x138] sm:$0xff]
    %v66 = vld [vmem:[#allocation2 + $0x140] sm:$0xff]
    %v67 = vld [vmem:[#allocation2 + $0x148] sm:$0xff]
    %v68 = vld [vmem:[#allocation2 + $0x150] sm:$0xff]
    %v69 = vld [vmem:[#allocation2 + $0x158] sm:$0xff]
    %v70 = vld [vmem:[#allocation2 + $0x160] sm:$0xff]
    %v71 = vld [vmem:[#allocation2 + $0x168] sm:$0xff]
    %v72 = vld [vmem:[#allocation2 + $0x170] sm:$0xff]
    %v73 = vld [vmem:[#allocation2 + $0x178] sm:$0xff]
    %74 = vmatprep.subr.mxu0 %v72
    %75 = vmatpush1.msra.mxu0 %v71
    %76 = vmatprep.subr.mxu0 %v69
    %77 = vmatpush1.msra.mxu0 %v68
    %78 = vmatprep.subr.mxu0 %v66
    %79 = vmatpush1.msra.mxu0 %v65
    %80 = vmatprep.subr.mxu0 %v63
    %81 = vmatpush1.msra.mxu0 %v62
    %82 = vmatprep.subr.mxu0 %v60
    %83 = vmatpush1.msra.mxu0 %v59
    %84 = vmatprep.subr.mxu0 %v57
    %85 = vmatpush1.msra.mxu0 %v56
    %86 = vmatprep.subr.mxu0 %v54
    %87 = vmatpush1.msra.mxu0 %v53
    %88 = vmatprep.subr.mxu0 %v51
    %89 = vmatpush1.msra.mxu0 %v50
    %90 = vmatprep.subr.mxu0 %v48
    %91 = vmatpush1.msra.mxu0 %v47
    %92 = vmatprep.subr.mxu0 %v45
    %93 = vmatpush1.msra.mxu0 %v44
    %94 = vmatprep.subr.mxu0 %v42
    %95 = vmatpush1.msra.mxu0 %v41
    %96 = vmatprep.subr.mxu0 %v39
    %97 = vmatpush1.msra.mxu0 %v38
    %98 = vmatprep.subr.mxu0 %v36
    %99 = vmatpush1.msra.mxu0 %v35
    %100 = vmatprep.subr.mxu0 %v33
    %101 = vmatpush1.msra.mxu0 %v32
    %102 = vmatprep.subr.mxu0 %v30
    %103 = vmatpush1.msra.mxu0 %v29
    %104 = vmatprep.subr.mxu0 %v27
    %105 = vmatpush1.msra.mxu0 %v26
    %106 = vmatprep.subr.mxu0 0.0
    %107 = vmatpush2.msra.mxu0 0.0
    %108 = vmatprep.subr.mxu0 0.0
    %109 = vmatpush2.msra.mxu0 0.0
    %110 = vmatprep.subr.mxu0 0.0
    %111 = vmatpush2.msra.mxu0 0.0
    %112 = vmatprep.subr.mxu0 0.0
    %113 = vmatpush2.msra.mxu0 0.0
    %114 = vmatprep.subr.mxu0 0.0
    %115 = vmatpush2.msra.mxu0 0.0
    %116 = vmatprep.subr.mxu0 0.0
    %117 = vmatpush2.msra.mxu0 0.0
    %118 = vmatprep.subr.mxu0 0.0
    %119 = vmatpush2.msra.mxu0 0.0
    %120 = vmatprep.subr.mxu0 0.0
    %121 = vmatpush2.msra.mxu0 0.0
    %122 = vmatprep.subr.mxu0 0.0
    %123 = vmatpush2.msra.mxu0 0.0
    %124 = vmatprep.subr.mxu0 0.0
    %125 = vmatpush2.msra.mxu0 0.0
    %126 = vmatprep.subr.mxu0 0.0
    %127 = vmatpush2.msra.mxu0 0.0
    %128 = vmatprep.subr.mxu0 0.0
    %129 = vmatpush2.msra.mxu0 0.0
    %130 = vmatprep.subr.mxu0 0.0
    %131 = vmatpush2.msra.mxu0 0.0
    %132 = vmatprep.subr.mxu0 0.0
    %133 = vmatpush2.msra.mxu0 0.0
    %134 = vmatprep.subr.mxu0 0.0
    %135 = vmatpush2.msra.mxu0 0.0
    %136 = vmatprep.subr.mxu0 0.0
    %137 = vmatpush2.msra.mxu0 0.0
    %138 = vmatprep.mubr.f32.mxu0 0.0
    %139 = vmatmul.mubr.f32.gmra.mxu0 %v25
    %v140 = vpop.f32.mrf.mxu0
    %v141 = vadd.f32 0.0, %v140
    %v142 = vpop.f32.mrf.mxu0
    %v143 = vadd.f32 0.0, %v142
    %144 = vdwg.mxu0
    %145 = vmatprep.subr.mxu0 0.0
    %146 = vmatpush1.msra.mxu0 %v73
    %147 = vmatprep.subr.mxu0 0.0
    %148 = vmatpush1.msra.mxu0 %v70
    %149 = vmatprep.subr.mxu0 0.0
    %150 = vmatpush1.msra.mxu0 %v67
    %151 = vmatprep.subr.mxu0 0.0
    %152 = vmatpush1.msra.mxu0 %v64
    %153 = vmatprep.subr.mxu0 0.0
    %154 = vmatpush1.msra.mxu0 %v61
    %155 = vmatprep.subr.mxu0 0.0
    %156 = vmatpush1.msra.mxu0 %v58
    %157 = vmatprep.subr.mxu0 0.0
    %158 = vmatpush1.msra.mxu0 %v55
    %159 = vmatprep.subr.mxu0 0.0
    %160 = vmatpush1.msra.mxu0 %v52
    %161 = vmatprep.subr.mxu0 0.0
    %162 = vmatpush1.msra.mxu0 %v49
    %163 = vmatprep.subr.mxu0 0.0
    %164 = vmatpush1.msra.mxu0 %v46
    %165 = vmatprep.subr.mxu0 0.0
    %166 = vmatpush1.msra.mxu0 %v43
    %167 = vmatprep.subr.mxu0 0.0
    %168 = vmatpush1.msra.mxu0 %v40
    %169 = vmatprep.subr.mxu0 0.0
    %170 = vmatpush1.msra.mxu0 %v37
    %171 = vmatprep.subr.mxu0 0.0
    %172 = vmatpush1.msra.mxu0 %v34
    %173 = vmatprep.subr.mxu0 0.0
    %174 = vmatpush1.msra.mxu0 %v31
    %175 = vmatprep.subr.mxu0 0.0
    %176 = vmatpush1.msra.mxu0 %v28
    %177 = vmatprep.subr.mxu0 0.0
    %178 = vmatpush2.msra.mxu0 0.0
    %179 = vmatprep.subr.mxu0 0.0
    %180 = vmatpush2.msra.mxu0 0.0
    %181 = vmatprep.subr.mxu0 0.0
    %182 = vmatpush2.msra.mxu0 0.0
    %183 = vmatprep.subr.mxu0 0.0
    %184 = vmatpush2.msra.mxu0 0.0
    %185 = vmatprep.subr.mxu0 0.0
    %186 = vmatpush2.msra.mxu0 0.0
    %187 = vmatprep.subr.mxu0 0.0
    %188 = vmatpush2.msra.mxu0 0.0
    %189 = vmatprep.subr.mxu0 0.0
    %190 = vmatpush2.msra.mxu0 0.0
    %191 = vmatprep.subr.mxu0 0.0
    %192 = vmatpush2.msra.mxu0 0.0
    %193 = vmatprep.subr.mxu0 0.0
    %194 = vmatpush2.msra.mxu0 0.0
    %195 = vmatprep.subr.mxu0 0.0
    %196 = vmatpush2.msra.mxu0 0.0
    %197 = vmatprep.subr.mxu0 0.0
    %198 = vmatpush2.msra.mxu0 0.0
    %199 = vmatprep.subr.mxu0 0.0
    %200 = vmatpush2.msra.mxu0 0.0
    %201 = vmatprep.subr.mxu0 0.0
    %202 = vmatpush2.msra.mxu0 0.0
    %203 = vmatprep.subr.mxu0 0.0
    %204 = vmatpush2.msra.mxu0 0.0
    %205 = vmatprep.subr.mxu0 0.0
    %206 = vmatpush2.msra.mxu0 0.0
    %207 = vmatprep.subr.mxu0 0.0
    %208 = vmatpush2.msra.mxu0 0.0
    %209 = vmatprep.mubr.f32.mxu0 0.0
    %210 = vmatmul.mubr.f32.gmra.mxu0 %v25
    %v211 = vpop.f32.mrf.mxu0
    %v212 = vadd.f32 0.0, %v211
    %v213 = vpop.f32.mrf.mxu0
    %214 = vdwg.mxu0
    %215 = vmatprep.subr.mxu0 0.0
    %216 = vmatpush1.xpose.msra.mxu0 0.0
    %217 = vmatprep.subr.mxu0 0.0
    %218 = vmatpush1.xpose.msra.mxu0 0.0
    %219 = vmatprep.subr.mxu0 0.0
    %220 = vmatpush1.xpose.msra.mxu0 0.0
    %221 = vmatprep.subr.mxu0 0.0
    %222 = vmatpush1.xpose.msra.mxu0 0.0
    %223 = vmatprep.subr.mxu0 0.0
    %224 = vmatpush1.xpose.msra.mxu0 0.0
    %225 = vmatprep.subr.mxu0 0.0
    %226 = vmatpush1.xpose.msra.mxu0 0.0
    %227 = vmatprep.subr.mxu0 0.0
    %228 = vmatpush1.xpose.msra.mxu0 0.0
    %229 = vmatprep.subr.mxu0 0.0
    %230 = vmatpush1.xpose.msra.mxu0 0.0
    %231 = vmatprep.subr.mxu0 0.0
    %232 = vmatpush1.xpose.msra.mxu0 0.0
    %233 = vmatprep.subr.mxu0 0.0
    %234 = vmatpush1.xpose.msra.mxu0 0.0
    %235 = vmatprep.subr.mxu0 0.0
    %236 = vmatpush1.xpose.msra.mxu0 0.0
    %237 = vmatprep.subr.mxu0 0.0
    %238 = vmatpush1.xpose.msra.mxu0 0.0
    %239 = vmatprep.subr.mxu0 0.0
    %240 = vmatpush1.xpose.msra.mxu0 0.0
    %241 = vmatprep.subr.mxu0 0.0
    %242 = vmatpush1.xpose.msra.mxu0 0.0
    %243 = vmatprep.subr.mxu0 0.0
    %244 = vmatpush1.xpose.msra.mxu0 0.0
    %245 = vmatprep.subr.mxu0 0.0
    %246 = vmatpush1.xpose.msra.mxu0 %v143
    %247 = vmatprep.subr.mxu0 0.0
    %248 = vmatpush2.xpose.msra.mxu0 0.0
    %249 = vmatprep.subr.mxu0 0.0
    %250 = vmatpush2.xpose.msra.mxu0 0.0
    %251 = vmatprep.subr.mxu0 0.0
    %252 = vmatpush2.xpose.msra.mxu0 0.0
    %253 = vmatprep.subr.mxu0 0.0
    %254 = vmatpush2.xpose.msra.mxu0 0.0
    %255 = vmatprep.subr.mxu0 0.0
    %256 = vmatpush2.xpose.msra.mxu0 0.0
    %257 = vmatprep.subr.mxu0 0.0
    %258 = vmatpush2.xpose.msra.mxu0 0.0
    %259 = vmatprep.subr.mxu0 0.0
    %260 = vmatpush2.xpose.msra.mxu0 0.0
    %261 = vmatprep.subr.mxu0 0.0
    %262 = vmatpush2.xpose.msra.mxu0 0.0
    %263 = vmatprep.subr.mxu0 0.0
    %264 = vmatpush2.xpose.msra.mxu0 0.0
    %265 = vmatprep.subr.mxu0 0.0
    %266 = vmatpush2.xpose.msra.mxu0 0.0
    %267 = vmatprep.subr.mxu0 0.0
    %268 = vmatpush2.xpose.msra.mxu0 0.0
    %269 = vmatprep.subr.mxu0 0.0
    %270 = vmatpush2.xpose.msra.mxu0 0.0
    %271 = vmatprep.subr.mxu0 0.0
    %272 = vmatpush2.xpose.msra.mxu0 0.0
    %273 = vmatprep.subr.mxu0 0.0
    %274 = vmatpush2.xpose.msra.mxu0 0.0
    %275 = vmatprep.subr.mxu0 0.0
    %276 = vmatpush2.xpose.msra.mxu0 0.0
    %277 = vmatprep.subr.mxu0 0.0
    %278 = vmatpush2.xpose.msra.mxu0 0.0
    %279 = vmatprep.mubr.f32.mxu0 0.0
    %280 = vmatmul.mubr.f32.gmra.mxu0 %v141
    %v281 = vpop.f32.mrf.mxu0
    %v282 = vadd.f32 0.0, %v281
    %v283 = vpop.f32.mrf.mxu0
    %284 = vdwg.mxu0
    %vm285 = vcmask 46080
    %v286 = vsel %vm285, %v282, -inf
    %287 = vmax.xlane.f32.xlu0 %v286
    %v288 = vpop.xlane.xlu0 %287
    %v289 = vsub.f32 %v282, %v288
    %v290 = vmul.f32 %v289, 1.442695
    %v291 = vpow.pop %v290
    %v292 = vsel %vm285, %v291, 0.0
    %293 = vadd.xlane.f32.xlu0 %v292
    %v294 = vpop.xlane.xlu0 %293
    %v295 = vrcp.pop %v294
    %vm296 = vcmask 48128
    %v298 = vsel %vm296, %v291, 0
    %vm300 = vcmask 1045504
    %v302 = vsel %vm300, %v212, 0
    %304 = vmatprep.subr.mxu0 0.0
    %305 = vmatpush1.msra.mxu0 0.0
    %306 = vmatprep.subr.mxu0 0.0
    %307 = vmatpush1.msra.mxu0 0.0
    %308 = vmatprep.subr.mxu0 0.0
    %309 = vmatpush1.msra.mxu0 0.0
    %310 = vmatprep.subr.mxu0 0.0
    %311 = vmatpush1.msra.mxu0 0.0
    %312 = vmatprep.subr.mxu0 0.0
    %313 = vmatpush1.msra.mxu0 0.0
    %314 = vmatprep.subr.mxu0 0.0
    %315 = vmatpush1.msra.mxu0 0.0
    %316 = vmatprep.subr.mxu0 0.0
    %317 = vmatpush1.msra.mxu0 0.0
    %318 = vmatprep.subr.mxu0 0.0
    %319 = vmatpush1.msra.mxu0 0.0
    %320 = vmatprep.subr.mxu0 0.0
    %321 = vmatpush1.msra.mxu0 0.0
    %322 = vmatprep.subr.mxu0 0.0
    %323 = vmatpush1.msra.mxu0 0.0
    %324 = vmatprep.subr.mxu0 0.0
    %325 = vmatpush1.msra.mxu0 0.0
    %326 = vmatprep.subr.mxu0 0.0
    %327 = vmatpush1.msra.mxu0 0.0
    %328 = vmatprep.subr.mxu0 0.0
    %329 = vmatpush1.msra.mxu0 0.0
    %330 = vmatprep.subr.mxu0 0.0
    %331 = vmatpush1.msra.mxu0 0.0
    %332 = vmatprep.subr.mxu0 0.0
    %333 = vmatpush1.msra.mxu0 0.0
    %334 = vmatprep.subr.mxu0 0.0
    %335 = vmatpush1.msra.mxu0 %v302
    %336 = vmatprep.subr.mxu0 0.0
    %337 = vmatpush2.msra.mxu0 0.0
    %338 = vmatprep.subr.mxu0 0.0
    %339 = vmatpush2.msra.mxu0 0.0
    %340 = vmatprep.subr.mxu0 0.0
    %341 = vmatpush2.msra.mxu0 0.0
    %342 = vmatprep.subr.mxu0 0.0
    %343 = vmatpush2.msra.mxu0 0.0
    %344 = vmatprep.subr.mxu0 0.0
    %345 = vmatpush2.msra.mxu0 0.0
    %346 = vmatprep.subr.mxu0 0.0
    %347 = vmatpush2.msra.mxu0 0.0
    %348 = vmatprep.subr.mxu0 0.0
    %349 = vmatpush2.msra.mxu0 0.0
    %350 = vmatprep.subr.mxu0 0.0
    %351 = vmatpush2.msra.mxu0 0.0
    %352 = vmatprep.subr.mxu0 0.0
    %353 = vmatpush2.msra.mxu0 0.0
    %354 = vmatprep.subr.mxu0 0.0
    %355 = vmatpush2.msra.mxu0 0.0
    %356 = vmatprep.subr.mxu0 0.0
    %357 = vmatpush2.msra.mxu0 0.0
    %358 = vmatprep.subr.mxu0 0.0
    %359 = vmatpush2.msra.mxu0 0.0
    %360 = vmatprep.subr.mxu0 0.0
    %361 = vmatpush2.msra.mxu0 0.0
    %362 = vmatprep.subr.mxu0 0.0
    %363 = vmatpush2.msra.mxu0 0.0
    %364 = vmatprep.subr.mxu0 0.0
    %365 = vmatpush2.msra.mxu0 0.0
    %366 = vmatprep.subr.mxu0 0.0
    %367 = vmatpush2.msra.mxu0 0.0
    %368 = vmatprep.mubr.f32.mxu0 0.0
    %369 = vmatmul.mubr.f32.gmra.mxu0 %v298
    %v370 = vpop.f32.mrf.mxu0
    %v371 = vadd.f32 0.0, %v370
    %v372 = vpop.f32.mrf.mxu0
    %373 = vdwg.mxu0
    %v374 = vmul.f32 %v371, %v295
    %375 = vst [vmem:[%s2] sm:$0x3f] %v374
    // Predicated region
    $region14: #{_batched_attention.1} parent=1 // pred_check
      _
    $region15: #{_batched_attention.1} parent=1 // pred_check_branch
      %377 = sbr.rel (0) target = $region17
    $region16: #{_batched_attention.1} parent=1 // pred_region
      _
    $region17: #{_batched_attention.1} parent=1 // pred_fallthru
      _
    // Predicated region
    $region18: #{_batched_attention.1} parent=1 // pred_check
      _
    $region19: #{_batched_attention.1} parent=1 // pred_check_branch
      %379 = sbr.rel (0) target = $region21
    $region20: #{_batched_attention.1} parent=1 // pred_region
      _
    $region21: #{_batched_attention.1} parent=1 // pred_fallthru
      _
    %380 = vsyncpa [#allocation3], 1

</llo_original>
